<compile_context>
chip_gen: v7x
topology: tpu7x:2x2x1
jax: 0.10.0
libtpu: 0.0.40
codegen_flags: <defaults>
</compile_context>

<pallas_src>
import functools

import jax
import jax.numpy as jnp
import numpy as np
from jax import lax
from jax.experimental import pallas as pl
from jax.experimental.pallas import tpu as pltpu


def _round_up(a, m):
    return (a + m - 1) // m * m


def _cdiv(a, b):
    return -(-a // b)


def _con_proximity_kernel(x_ref, c_ref, c2_ref, cw_ref, lab_ref,
                          out_ref, x2_ref, *scratch,
                          nc, batch_size, mask_rows, mask_cols, mxu_dtype):
    i = pl.program_id(0)            # batch tile index (parallel)
    j = pl.program_id(1)            # class tile index (arbitrary / reduction)
    tb = x_ref.shape[0]
    tc = c_ref.shape[0]
    acc_ref = scratch[0] if nc > 1 else None

    @pl.when(j == 0)
    def _():
        # ||x||^2 computed once per batch tile (saves a wrapper-side HBM pass).
        xf = x_ref[...].astype(jnp.float32)
        x2_ref[...] = jnp.sum(xf * xf, axis=1, keepdims=True)
        if nc > 1:
            acc_ref[...] = jnp.zeros_like(acc_ref)

    # MXU matmul: bf16 operands (cast on the refs), f32 accumulation.
    x_mm = x_ref[...] if mxu_dtype is None else x_ref[...].astype(mxu_dtype)
    c_mm = c_ref[...] if mxu_dtype is None else c_ref[...].astype(mxu_dtype)
    xc = lax.dot_general(x_mm, c_mm,
                         dimension_numbers=(((1,), (1,)), ((), ())),
                         preferred_element_type=jnp.float32)      # (tb, tc)

    distmat = x2_ref[...] + c2_ref[...] - 2.0 * xc                # f32

    # own-class entries end up at the 1e-12 floor (matches distmat * (1-mask)
    # followed by clamp in the reference).
    col_ids = j * tc + lax.broadcasted_iota(jnp.int32, (1, tc), 1)
    own = lab_ref[...] == col_ids                                 # (tb,1)==(1,tc)
    contrib = jnp.clip(jnp.where(own, 0.0, distmat), 1e-12, 1e12)

    if mask_cols:
        # padded classes: centers were zero-padded, so contrib is finite -> a
        # single multiplicative 0/1 weight is enough to drop them.
        contrib = contrib * cw_ref[...]
    if mask_rows:
        # boundary batch rows (unpadded x): data may be garbage -> select.
        row_ids = i * tb + lax.broadcasted_iota(jnp.int32, (tb, 1), 0)
        contrib = jnp.where(row_ids < batch_size, contrib, 0.0)

    if nc == 1:
        # class loop collapsed: no accumulator RMW, single sublane reduce,
        # lane-dense (1,1,tc) store.
        out_ref[...] = jnp.sum(contrib, axis=0, keepdims=True)[None]
    else:
        acc_ref[...] += contrib                                   # pure VPU add

        @pl.when(j == nc - 1)
        def _():
            out_ref[...] = jnp.sum(acc_ref[...], axis=0, keepdims=True)[None]


def _vmem_need_bytes(tb, tc, D, in_itemsize, nc):
    """Generous double-buffered VMEM estimate for the chosen tiles."""
    per_buf = (tb * D * in_itemsize            # x tile
               + tc * D * in_itemsize          # centers tile
               + 2 * 8 * tc * 4                # ||c||^2 + class-weight rows
               + tb * 128 * 4                  # labels column (lane padded)
               + 8 * tc * 4)                   # output block
    scratch = tb * 128 * 4                     # ||x||^2 scratch (lane padded)
    if nc > 1:
        scratch += tb * tc * 4                 # accumulator
    return 2 * per_buf + scratch


def con_proximity_loss(x, centers, labels, *, tb=None, tc=None,
                       mxu_dtype=jnp.bfloat16, vmem_budget_bytes=40 << 20):
    """Pallas implementation of Con_Proximity.forward(x, labels)."""
    B, D = x.shape
    C, Dc = centers.shape
    assert D == Dc
    assert C > 1, "num_classes must be > 1 (reference divides by C - 1)"

    itemsize = max(jnp.dtype(x.dtype).itemsize, jnp.dtype(centers.dtype).itemsize)
    Bp8 = _round_up(B, 8)

    # ---- class tile: lane-dense multiple of 128; prefer tc = padded C so the
    # class reduction loop disappears (nc == 1) when it fits the VMEM budget.
    if tc is not None:
        tc_cands = [max(128, _round_up(tc, 128))]
    else:
        cp0 = _round_up(C, 128)
        tc_cands = [cp0] + [t for t in (256, 128) if t < cp0]

    # ---- batch tile: sublane-aligned, up to 256 wide.
    if tb is not None:
        tb_cands = [max(8, _round_up(tb, 8))]
    else:
        tb_cands = sorted({min(256, Bp8)} |
                          {t for t in (256, 128, 64, 32, 16, 8) if t <= Bp8},
                          reverse=True)

    chosen = None
    for tc_try in tc_cands:
        nc_try = _cdiv(_round_up(C, tc_try), tc_try)
        for tb_try in tb_cands:
            if _vmem_need_bytes(tb_try, tc_try, D, itemsize, nc_try) <= vmem_budget_bytes:
                chosen = (tb_try, tc_try)
                break
        if chosen is not None:
            break
    if chosen is None:
        # TODO(synk): for extremely large feat_dim, add a K (feature) grid axis
        # with partial accumulation instead of falling back to minimal tiles.
        chosen = (8, 128)
    tb, tc = chosen

    # v7x megacore: make sure the parallel batch axis has >= 2 tiles.
    if _cdiv(B, tb) == 1 and Bp8 > 8:
        tb = max(8, _round_up(_cdiv(B, 2), 8))

    nb = _cdiv(B, tb)
    Cp = _round_up(C, tc)
    nc = Cp // tc
    mask_rows = (B % tb) != 0
    mask_cols = Cp != C

    # Pad only the (small, parameter-sized) centers; x / labels stay unpadded —
    # boundary batch rows are discarded by the in-kernel row select.
    cen = centers
    if mask_cols:
        cen = jnp.pad(centers, ((0, Cp - C), (0, 0)))
    c2 = jnp.sum(cen.astype(jnp.float32) ** 2, axis=1, keepdims=True).T     # (1,Cp)
    cw = (jnp.arange(Cp, dtype=jnp.int32) < C).astype(jnp.float32).reshape(1, Cp)
    lab = labels.astype(jnp.int32).reshape(B, 1)

    kernel = functools.partial(
        _con_proximity_kernel, nc=nc, batch_size=B,
        mask_rows=mask_rows, mask_cols=mask_cols, mxu_dtype=mxu_dtype)

    scratch_shapes = [pltpu.VMEM((tb, 1), jnp.float32)]          # ||x||^2
    if nc > 1:
        scratch_shapes.append(pltpu.VMEM((tb, tc), jnp.float32))  # accumulator

    need = _vmem_need_bytes(tb, tc, D, itemsize, nc)
    vmem_limit = int(min(48 << 20, max(32 << 20, need + (8 << 20))))

    partial_sums = pl.pallas_call(
        kernel,
        out_shape=jax.ShapeDtypeStruct((nb, 1, tc), jnp.float32),
        grid_spec=pltpu.PrefetchScalarGridSpec(
            num_scalar_prefetch=0,
            grid=(nb, nc),                                        # (batch, class)
            in_specs=[
                pl.BlockSpec((tb, D), lambda i, j: (i, 0)),       # x
                pl.BlockSpec((tc, D), lambda i, j: (j, 0)),       # centers
                pl.BlockSpec((1, tc), lambda i, j: (0, j)),       # ||c||^2
                pl.BlockSpec((1, tc), lambda i, j: (0, j)),       # class weight
                pl.BlockSpec((tb, 1), lambda i, j: (i, 0)),       # labels
            ],
            out_specs=pl.BlockSpec((1, 1, tc), lambda i, j: (i, 0, 0)),
            scratch_shapes=scratch_shapes,
        ),
        compiler_params=pltpu.CompilerParams(
            dimension_semantics=("parallel", "arbitrary"),
            vmem_limit_bytes=vmem_limit),
    )(x, cen, c2, cw, lab)

    # Tiny final reduction over per-batch-tile lane partials.
    return jnp.sum(partial_sums) / (B * (C - 1))


def _reference(x, centers, labels):
    """Pure-JAX f32 reference matching the PyTorch module."""
    xf = x.astype(jnp.float32)
    cf = centers.astype(jnp.float32)
    B = xf.shape[0]
    C = cf.shape[0]
    x2 = jnp.sum(xf ** 2, axis=1, keepdims=True)
    c2 = jnp.sum(cf ** 2, axis=1, keepdims=True).T
    distmat = x2 + c2 - 2.0 * (xf @ cf.T)
    mask = labels[:, None] == jnp.arange(C)[None, :]
    dist = jnp.clip(distmat * (1.0 - mask.astype(jnp.float32)), 1e-12, 1e12)
    return jnp.sum(dist) / (B * (C - 1))


if __name__ == "__main__":
    key = jax.random.PRNGKey(0)

    # Case 1: small shapes, class loop collapsed (nc == 1), clean batch tiles.
    k1, k2, k3, key = jax.random.split(key, 4)
    B, D, C = 16, 64, 10
    x = jax.random.normal(k1, (B, D), dtype=jnp.float32)
    centers = jax.random.normal(k2, (C, D), dtype=jnp.float32)   # ~ randn, like the module
    labels = jax.random.randint(k3, (B,), 0, C, dtype=jnp.int32)
    loss = jax.block_until_ready(con_proximity_loss(x, centers, labels))
    ref = _reference(x, centers, labels)
    assert np.allclose(np.asarray(loss), np.asarray(ref), rtol=1e-2, atol=1e-2), (loss, ref)

    # Case 2: forces the multi-class-tile reduction path (nc > 1) and the
    # row-boundary mask (B % tb != 0).
    k1, k2, k3, key = jax.random.split(key, 4)
    B, D, C = 24, 128, 200
    x = jax.random.normal(k1, (B, D), dtype=jnp.float32)
    centers = jax.random.normal(k2, (C, D), dtype=jnp.float32)
    labels = jax.random.randint(k3, (B,), 0, C, dtype=jnp.int32)
    loss = jax.block_until_ready(con_proximity_loss(x, centers, labels, tc=128))
    ref = _reference(x, centers, labels)
    assert np.allclose(np.asarray(loss), np.asarray(ref), rtol=1e-2, atol=1e-2), (loss, ref)

    print("KERNEL_OK")
</pallas_src>

<mosaic_0001>
module attributes {stable_mosaic.version = 11 : i64} {
  func.func @_con_proximity_kernel(%arg0: i32, %arg1: i32, %arg2: memref<8x64xf32, #tpu.memory_space<vmem>>, %arg3: memref<128x64xf32, #tpu.memory_space<vmem>>, %arg4: memref<1x128xf32, #tpu.memory_space<vmem>>, %arg5: memref<1x128xf32, #tpu.memory_space<vmem>>, %arg6: memref<8x1xi32, #tpu.memory_space<vmem>>, %arg7: memref<1x1x128xf32, #tpu.memory_space<vmem>>, %arg8: memref<8x1xf32, #tpu.memory_space<vmem>>) attributes {dimension_semantics = [#tpu.dimension_semantics<parallel>, #tpu.dimension_semantics<arbitrary>], iteration_bounds = array<i64: 2, 1>, scalar_prefetch = 0 : i64, scratch_operands = 1 : i64, tpu.core_type = #tpu.core_type<tc>, window_params = [{transform_indices = @transform_0, window_bounds = array<i64: 8, 64>}, {transform_indices = @transform_1, window_bounds = array<i64: 128, 64>}, {transform_indices = @transform_2, window_bounds = array<i64: 1, 128>}, {transform_indices = @transform_3, window_bounds = array<i64: 1, 128>}, {transform_indices = @transform_4, window_bounds = array<i64: 8, 1>}, {transform_indices = @transform_5, window_bounds = array<i64: 1, 1, 128>}]} {
    %c0_i32 = arith.constant 0 : i32
    %0 = arith.cmpi eq, %arg1, %c0_i32 : i32
    %1 = arith.extui %0 : i1 to i32
    %c0_i32_0 = arith.constant 0 : i32
    %2 = arith.cmpi ne, %1, %c0_i32_0 : i32
    scf.if %2 {
      %c0_20 = arith.constant 0 : index
      %c0_21 = arith.constant 0 : index
      %37 = vector.load %arg2[%c0_20, %c0_21] : memref<8x64xf32, #tpu.memory_space<vmem>>, vector<8x64xf32>
      %38 = arith.mulf %37, %37 : vector<8x64xf32>
      %cst_22 = arith.constant dense<0.000000e+00> : vector<8xf32>
      %39 = vector.multi_reduction <add>, %38, %cst_22 [1] : vector<8x64xf32> to vector<8xf32>
      %40 = vector.shape_cast %39 : vector<8xf32> to vector<8x1xf32>
      %c0_23 = arith.constant 0 : index
      %c0_24 = arith.constant 0 : index
      %41 = vector.load %arg8[%c0_23, %c0_24] : memref<8x1xf32, #tpu.memory_space<vmem>>, vector<8x1xf32>
      tpu.vector_store %arg8[%c0_23, %c0_24], %40 {strides = array<i32>} : memref<8x1xf32, #tpu.memory_space<vmem>>, vector<8x1xf32>,
    } else {
    }
    %c0 = arith.constant 0 : index
    %c0_1 = arith.constant 0 : index
    %3 = vector.load %arg2[%c0, %c0_1] : memref<8x64xf32, #tpu.memory_space<vmem>>, vector<8x64xf32>
    %4 = arith.truncf %3 : vector<8x64xf32> to vector<8x64xbf16>
    %c0_2 = arith.constant 0 : index
    %c0_3 = arith.constant 0 : index
    %5 = vector.load %arg3[%c0_2, %c0_3] : memref<128x64xf32, #tpu.memory_space<vmem>>, vector<128x64xf32>
    %6 = arith.truncf %5 : vector<128x64xf32> to vector<128x64xbf16>
    %cst = arith.constant dense<0.000000e+00> : vector<8x128xf32>
    %7 = tpu.matmul %4, %6, %cst {dimension_numbers = #tpu.dot_dimension_numbers<[1], [1], [0], [0], [0, 0, 1, 0], [], []>} : vector<8x64xbf16>, vector<128x64xbf16>, vector<8x128xf32> -> vector<8x128xf32>
    %c0_4 = arith.constant 0 : index
    %c0_5 = arith.constant 0 : index
    %8 = vector.load %arg8[%c0_4, %c0_5] : memref<8x1xf32, #tpu.memory_space<vmem>>, vector<8x1xf32>
    %c0_6 = arith.constant 0 : index
    %c0_7 = arith.constant 0 : index
    %9 = vector.load %arg4[%c0_6, %c0_7] : memref<1x128xf32, #tpu.memory_space<vmem>>, vector<1x128xf32>
    %10 = vector.broadcast %8 : vector<8x1xf32> to vector<8x128xf32>
    %11 = vector.broadcast %9 : vector<1x128xf32> to vector<8x128xf32>
    %12 = arith.addf %10, %11 : vector<8x128xf32>
    %cst_8 = arith.constant 2.000000e+00 : f32
    %13 = vector.broadcast %cst_8 : f32 to vector<8x128xf32>
    %14 = arith.mulf %13, %7 : vector<8x128xf32>
    %15 = arith.subf %12, %14 : vector<8x128xf32>
    %c128_i32 = arith.constant 128 : i32
    %16 = arith.muli %arg1, %c128_i32 : i32
    %17 = tpu.iota {dimensions = array<i32: 1>} : vector<1x128xi32>
    %18 = vector.broadcast %16 : i32 to vector<1x128xi32>
    %19 = arith.addi %18, %17 : vector<1x128xi32>
    %c0_9 = arith.constant 0 : index
    %c0_10 = arith.constant 0 : index
    %20 = vector.load %arg6[%c0_9, %c0_10] : memref<8x1xi32, #tpu.memory_space<vmem>>, vector<8x1xi32>
    %21 = vector.broadcast %20 : vector<8x1xi32> to vector<8x128xi32>
    %22 = vector.broadcast %19 : vector<1x128xi32> to vector<8x128xi32>
    %23 = arith.cmpi eq, %21, %22 : vector<8x128xi32>
    %cst_11 = arith.constant 0.000000e+00 : f32
    %24 = vector.broadcast %cst_11 : f32 to vector<8x128xf32>
    %25 = arith.select %23, %24, %15 : vector<8x128xi1>, vector<8x128xf32>
    %cst_12 = arith.constant 9.99999996E-13 : f32
    %cst_13 = arith.constant 9.99999995E+11 : f32
    %26 = vector.broadcast %cst_12 : f32 to vector<8x128xf32>
    %27 = arith.maximumf %26, %25 : vector<8x128xf32>
    %28 = vector.broadcast %cst_13 : f32 to vector<8x128xf32>
    %29 = arith.minimumf %28, %27 : vector<8x128xf32>
    %c0_14 = arith.constant 0 : index
    %c0_15 = arith.constant 0 : index
    %30 = vector.load %arg5[%c0_14, %c0_15] : memref<1x128xf32, #tpu.memory_space<vmem>>, vector<1x128xf32>
    %31 = vector.broadcast %30 : vector<1x128xf32> to vector<8x128xf32>
    %32 = arith.mulf %29, %31 : vector<8x128xf32>
    %cst_16 = arith.constant dense<0.000000e+00> : vector<128xf32>
    %33 = vector.multi_reduction <add>, %32, %cst_16 [0] : vector<8x128xf32> to vector<128xf32>
    %34 = vector.shape_cast %33 : vector<128xf32> to vector<1x128xf32>
    %35 = vector.shape_cast %34 : vector<1x128xf32> to vector<1x1x128xf32>
    %c0_17 = arith.constant 0 : index
    %c0_18 = arith.constant 0 : index
    %c0_19 = arith.constant 0 : index
    %36 = vector.load %arg7[%c0_17, %c0_18, %c0_19] : memref<1x1x128xf32, #tpu.memory_space<vmem>>, vector<1x1x128xf32>
    tpu.vector_store %arg7[%c0_17, %c0_18, %c0_19], %35 {strides = array<i32>} : memref<1x1x128xf32, #tpu.memory_space<vmem>>, vector<1x1x128xf32>,
    return
  }
  func.func @transform_0(%arg0: i32, %arg1: i32) -> (i32, i32) {
    %c0_i32 = arith.constant 0 : i32
    %c0_i32_0 = arith.constant 0 : i32
    return %arg0, %c0_i32 : i32, i32
  }
  func.func @transform_1(%arg0: i32, %arg1: i32) -> (i32, i32) {
    %c0_i32 = arith.constant 0 : i32
    %c0_i32_0 = arith.constant 0 : i32
    return %arg1, %c0_i32 : i32, i32
  }
  func.func @transform_2(%arg0: i32, %arg1: i32) -> (i32, i32) {
    %c0_i32 = arith.constant 0 : i32
    %c0_i32_0 = arith.constant 0 : i32
    return %c0_i32, %arg1 : i32, i32
  }
  func.func @transform_3(%arg0: i32, %arg1: i32) -> (i32, i32) {
    %c0_i32 = arith.constant 0 : i32
    %c0_i32_0 = arith.constant 0 : i32
    return %c0_i32, %arg1 : i32, i32
  }
  func.func @transform_4(%arg0: i32, %arg1: i32) -> (i32, i32) {
    %c0_i32 = arith.constant 0 : i32
    %c0_i32_0 = arith.constant 0 : i32
    return %arg0, %c0_i32 : i32, i32
  }
  func.func @transform_5(%arg0: i32, %arg1: i32) -> (i32, i32, i32) {
    %c0_i32 = arith.constant 0 : i32
    %c0_i32_0 = arith.constant 0 : i32
    %c0_i32_1 = arith.constant 0 : i32
    return %arg0, %c0_i32, %c0_i32_0 : i32, i32, i32
  }
}

</mosaic_0001>

<llo_original>
// kernel: tpu_custom_call.1
$region0: #{tpu_custom_call.1}
  #allocation0 [shape = 'u32[]', space=smem, size = 0x4, offset = 0x4, fixed_abs, tag = 'smem constant byte address 0x4 - core index']
  #allocation1 [shape = 'u32[144,128]{1,0:T(1,128)}', space=vmem, size = 0x12000, scoped, tag = 'internal scratch']
  #allocation2 [shape = 'f32[8,1]{1,0:T(8,128)}', space=vmem, size = 0x1000, scoped, tag = 'scratch operand']
  %s0 = inlined_call_operand.vmem [shape: f32[16,64], index: 0, kind: input, shape index: {}]
  %s1 = inlined_call_operand.vmem [shape: f32[128,64], index: 1, kind: input, shape index: {}]
  %s2 = inlined_call_operand.vmem [shape: f32[1,128], index: 2, kind: input, shape index: {}]
  %s3 = inlined_call_operand.vmem [shape: f32[1,128], index: 3, kind: input, shape index: {}]
  %s4 = inlined_call_operand.vmem [shape: s32[16,1], index: 4, kind: input, shape index: {}]
  %s5 = inlined_call_operand.hbm [shape: f32[2,1,128], index: 5, kind: output, shape index: {}]
  %s6 = sld [smem:[#allocation0]]
  $region57: #{tpu_custom_call.1} parent=0
    _
  %s8 = ssub.s32 1, %s6
  %s9 = scalar_select 0, %s8, %s6
  $region1: #{tpu_custom_call.1} parent=0
    #allocation3 [shape = 'u8[1024]{0}', space=vmem, size = 0x400, scoped, tag = 'output window, operand 0']
    #allocation4 [shape = 's32[2]{0}', space=sflag, size = 0x8, scoped, tag = 'scoped memory for tpu_custom_call.1']
    %10 = vsyncpa [#allocation4], 0
    %s11 = scalar_lea.sflag [#allocation4], 1
    %12 = vsyncpa %s11, 0
    loop: start=0, step=1, limit=4
    $region2: #{tpu_custom_call.1} parent=1 // loop_pre_header
      _
    $region3: #{tpu_custom_call.1} parent=1 // loop_header
      %s14 = sphi 0, %s18
      %p15 = scmp.ge.s32.totalorder %s14, 4
      %s21 = sphi 0, %s33
      %s22 = sphi 0, %s29
      %s23 = sphi 0, %s21
      %s24 = sphi 0, %s22
      %s25 = sphi 0, %s23
      %s26 = sphi 0, %s24
      %s36 = sphi 0, %s38
      %s39 = sphi 0, %s36
      %s40 = sphi 0, %s39
      %s56 = sphi 0, %s40
      %s62 = sphi 0, %s64
      %s65 = sphi 0, %s62
      %s66 = sphi 0, %s65
      %s82 = sphi 0, %s66
      %s88 = sphi 0, %s90
      %s91 = sphi 0, %s88
      %s92 = sphi 0, %s91
      %s108 = sphi 0, %s92
      %s114 = sphi 0, %s116
      %s117 = sphi 0, %s114
      %s118 = sphi 0, %s117
      %s134 = sphi 0, %s118
      %s140 = sphi 0, %s142
      %s143 = sphi 0, %s140
      %s144 = sphi 0, %s143
      %s160 = sphi 0, %s144
      %s166 = sphi 0, %s168
      %s169 = sphi 0, %s166
      %s170 = sphi 0, %s169
      %s186 = sphi 0, %s170
    $region4: #{tpu_custom_call.1} parent=1 // loop_header_branch
      %17 = sbr.rel (%p15) target = $region8
    $region5: #{tpu_custom_call.1} parent=1 // loop_body
      %s19 = ssub.s32 %s14, 1
      %s20 = ssub.s32 %s14, 2
      %s27 = sadd.s32 1, %s22
      %p28 = scmp.ge.s32.totalorder %s27, 1
      %s29 = scalar_select %p28, 0, %s27
      %s30 = sadd.s32 1, %s21
      %s31 = scalar_select %p28, %s30, %s21
      %p32 = scmp.ge.s32.totalorder %s31, 2
      %s33 = scalar_select %p32, 0, %s31
      %s34 = ssub.s32 %s21, %s33
      %p35 = scmp.eq.s32.totalorder %s34, 0
      %s37 = sadd.s32 %s36, 1
      %s38 = scalar_select %p35, %s36, %s37
      %p41 = pneg %p35
      %p42 = scmp.eq.s32.totalorder %s14, 1
      %p43 = por %p41, %p42
      %p44 = scmp.ne.s32.totalorder %s36, %s39
      %p45 = scmp.eq.s32.totalorder %s14, 0
      %p46 = por %p44, %p45
      %p47 = scmp.ne.s32.totalorder %s36, %s39
      %p48 = scmp.eq.s32.totalorder %s19, 1
      %p49 = por %p47, %p48
      %p50 = scmp.ne.s32.totalorder %s39, %s40
      %p51 = scmp.eq.s32.totalorder %s19, 0
      %p52 = por %p50, %p51
      %p53 = scmp.ne.s32.totalorder %s39, %s40
      %p54 = scmp.eq.s32.totalorder %s20, 1
      %p55 = por %p53, %p54
      %p57 = scmp.ne.s32.totalorder %s40, %s56
      %p58 = scmp.eq.s32.totalorder %s20, 0
      %p59 = por %p57, %p58
      %s60 = ssub.s32 %s22, %s29
      %p61 = scmp.eq.s32.totalorder %s60, 0
      %s63 = sadd.s32 %s62, 1
      %s64 = scalar_select %p61, %s62, %s63
      %p67 = pneg %p61
      %p68 = scmp.eq.s32.totalorder %s14, 1
      %p69 = por %p67, %p68
      %p70 = scmp.ne.s32.totalorder %s62, %s65
      %p71 = scmp.eq.s32.totalorder %s14, 0
      %p72 = por %p70, %p71
      %p73 = scmp.ne.s32.totalorder %s62, %s65
      %p74 = scmp.eq.s32.totalorder %s19, 1
      %p75 = por %p73, %p74
      %p76 = scmp.ne.s32.totalorder %s65, %s66
      %p77 = scmp.eq.s32.totalorder %s19, 0
      %p78 = por %p76, %p77
      %p79 = scmp.ne.s32.totalorder %s65, %s66
      %p80 = scmp.eq.s32.totalorder %s20, 1
      %p81 = por %p79, %p80
      %p83 = scmp.ne.s32.totalorder %s66, %s82
      %p84 = scmp.eq.s32.totalorder %s20, 0
      %p85 = por %p83, %p84
      %s86 = ssub.s32 %s22, %s29
      %p87 = scmp.eq.s32.totalorder %s86, 0
      %s89 = sadd.s32 %s88, 1
      %s90 = scalar_select %p87, %s88, %s89
      %p93 = pneg %p87
      %p94 = scmp.eq.s32.totalorder %s14, 1
      %p95 = por %p93, %p94
      %p96 = scmp.ne.s32.totalorder %s88, %s91
      %p97 = scmp.eq.s32.totalorder %s14, 0
      %p98 = por %p96, %p97
      %p99 = scmp.ne.s32.totalorder %s88, %s91
      %p100 = scmp.eq.s32.totalorder %s19, 1
      %p101 = por %p99, %p100
      %p102 = scmp.ne.s32.totalorder %s91, %s92
      %p103 = scmp.eq.s32.totalorder %s19, 0
      %p104 = por %p102, %p103
      %p105 = scmp.ne.s32.totalorder %s91, %s92
      %p106 = scmp.eq.s32.totalorder %s20, 1
      %p107 = por %p105, %p106
      %p109 = scmp.ne.s32.totalorder %s92, %s108
      %p110 = scmp.eq.s32.totalorder %s20, 0
      %p111 = por %p109, %p110
      %s112 = ssub.s32 %s22, %s29
      %p113 = scmp.eq.s32.totalorder %s112, 0
      %s115 = sadd.s32 %s114, 1
      %s116 = scalar_select %p113, %s114, %s115
      %p119 = pneg %p113
      %p120 = scmp.eq.s32.totalorder %s14, 1
      %p121 = por %p119, %p120
      %p122 = scmp.ne.s32.totalorder %s114, %s117
      %p123 = scmp.eq.s32.totalorder %s14, 0
      %p124 = por %p122, %p123
      %p125 = scmp.ne.s32.totalorder %s114, %s117
      %p126 = scmp.eq.s32.totalorder %s19, 1
      %p127 = por %p125, %p126
      %p128 = scmp.ne.s32.totalorder %s117, %s118
      %p129 = scmp.eq.s32.totalorder %s19, 0
      %p130 = por %p128, %p129
      %p131 = scmp.ne.s32.totalorder %s117, %s118
      %p132 = scmp.eq.s32.totalorder %s20, 1
      %p133 = por %p131, %p132
      %p135 = scmp.ne.s32.totalorder %s118, %s134
      %p136 = scmp.eq.s32.totalorder %s20, 0
      %p137 = por %p135, %p136
      %s138 = ssub.s32 %s21, %s33
      %p139 = scmp.eq.s32.totalorder %s138, 0
      %s141 = sadd.s32 %s140, 1
      %s142 = scalar_select %p139, %s140, %s141
      %p145 = pneg %p139
      %p146 = scmp.eq.s32.totalorder %s14, 1
      %p147 = por %p145, %p146
      %p148 = scmp.ne.s32.totalorder %s140, %s143
      %p149 = scmp.eq.s32.totalorder %s14, 0
      %p150 = por %p148, %p149
      %p151 = scmp.ne.s32.totalorder %s140, %s143
      %p152 = scmp.eq.s32.totalorder %s19, 1
      %p153 = por %p151, %p152
      %p154 = scmp.ne.s32.totalorder %s143, %s144
      %p155 = scmp.eq.s32.totalorder %s19, 0
      %p156 = por %p154, %p155
      %p157 = scmp.ne.s32.totalorder %s143, %s144
      %p158 = scmp.eq.s32.totalorder %s20, 1
      %p159 = por %p157, %p158
      %p161 = scmp.ne.s32.totalorder %s144, %s160
      %p162 = scmp.eq.s32.totalorder %s20, 0
      %p163 = por %p161, %p162
      %s164 = ssub.s32 %s21, %s33
      %p165 = scmp.eq.s32.totalorder %s164, 0
      %s167 = sadd.s32 %s166, 1
      %s168 = scalar_select %p165, %s166, %s167
      %p171 = pneg %p165
      %p172 = scmp.eq.s32.totalorder %s14, 1
      %p173 = por %p171, %p172
      %p174 = scmp.ne.s32.totalorder %s166, %s169
      %p175 = scmp.eq.s32.totalorder %s14, 0
      %p176 = por %p174, %p175
      %p177 = scmp.ne.s32.totalorder %s166, %s169
      %p178 = scmp.eq.s32.totalorder %s19, 1
      %p179 = por %p177, %p178
      %p180 = scmp.ne.s32.totalorder %s169, %s170
      %p181 = scmp.eq.s32.totalorder %s19, 0
      %p182 = por %p180, %p181
      %p183 = scmp.ne.s32.totalorder %s169, %s170
      %p184 = scmp.eq.s32.totalorder %s20, 1
      %p185 = por %p183, %p184
      %p187 = scmp.ne.s32.totalorder %s170, %s186
      %p188 = scmp.eq.s32.totalorder %s20, 0
      %p189 = por %p187, %p188
      %p190 = scmp.le.s32.totalorder 1, %s14
      %p191 = scmp.lt.s32.totalorder %s14, 3
      %p192 = pnand %p190, %p191
      %p193 = pneg %p192
      // Predicated region
      $region9: #{tpu_custom_call.1} parent=5 // pred_check
        _
      $region10: #{tpu_custom_call.1} parent=5 // pred_check_branch
        %195 = sbr.rel (%p192) target = $region12
      $region11: #{tpu_custom_call.1} parent=5 // pred_region
        %s196 = ssub.s32 %s14, 1
        // Predicated region
        $region13: #{tpu_custom_call.1} parent=11 // pred_check
          %p197 = pneg %p78
        $region14: #{tpu_custom_call.1} parent=11 // pred_check_branch
          %199 = sbr.rel (%p197) target = $region16
        $region15: #{tpu_custom_call.1} parent=11 // pred_region
          %s200 = smul.u32 16, %s24
          %p201 = scmp.lt.s32.totalorder %s200, 15
          %s202 = scalar_select %p201, %s200, 15
          %s203 = smul.addr %s202, 8
          %s204 = scalar_lea.vmem %s1, %s203
          %s205 = smul.u32 16, %s24
        $region16: #{tpu_custom_call.1} parent=11 // pred_fallthru
          _
        // Predicated region
        $region17: #{tpu_custom_call.1} parent=11 // pred_check
          %p206 = pneg %p104
        $region18: #{tpu_custom_call.1} parent=11 // pred_check_branch
          %208 = sbr.rel (%p206) target = $region20
        $region19: #{tpu_custom_call.1} parent=11 // pred_region
          %p209 = scmp.lt.s32.totalorder %s24, 0
          %s210 = scalar_select %p209, %s24, 0
          %s211 = scalar_lea.vmem %s2, %s210
        $region20: #{tpu_custom_call.1} parent=11 // pred_fallthru
          _
        // Predicated region
        $region21: #{tpu_custom_call.1} parent=11 // pred_check
          %p212 = pneg %p130
        $region22: #{tpu_custom_call.1} parent=11 // pred_check_branch
          %214 = sbr.rel (%p212) target = $region24
        $region23: #{tpu_custom_call.1} parent=11 // pred_region
          %p215 = scmp.lt.s32.totalorder %s24, 0
          %s216 = scalar_select %p215, %s24, 0
          %s217 = scalar_lea.vmem %s3, %s216
        $region24: #{tpu_custom_call.1} parent=11 // pred_fallthru
          _
      $region12: #{tpu_custom_call.1} parent=5 // pred_fallthru
        _
      %p218 = scmp.lt.s32.totalorder %s14, 2
      // Predicated region
      $region25: #{tpu_custom_call.1} parent=5 // pred_check
        %p219 = pneg %p218
      $region26: #{tpu_custom_call.1} parent=5 // pred_check_branch
        %221 = sbr.rel (%p219) target = $region28
      $region27: #{tpu_custom_call.1} parent=5 // pred_region
        // Predicated region
        $region29: #{tpu_custom_call.1} parent=27 // pred_check
          %p222 = pneg %p46
        $region30: #{tpu_custom_call.1} parent=27 // pred_check_branch
          %224 = sbr.rel (%p222) target = $region32
        $region31: #{tpu_custom_call.1} parent=27 // pred_region
          %p225 = scmp.lt.s32.totalorder %s21, 1
          %s226 = scalar_select %p225, %s21, 1
          %s227 = smul.addr %s226, 8
          %s228 = scalar_lea.vmem %s0, %s227
        $region32: #{tpu_custom_call.1} parent=27 // pred_fallthru
          _
        // Predicated region
        $region33: #{tpu_custom_call.1} parent=27 // pred_check
          %p229 = pneg %p150
        $region34: #{tpu_custom_call.1} parent=27 // pred_check_branch
          %231 = sbr.rel (%p229) target = $region36
        $region35: #{tpu_custom_call.1} parent=27 // pred_region
          %p232 = scmp.lt.s32.totalorder %s21, 1
          %s233 = scalar_select %p232, %s21, 1
          %s234 = smul.addr %s233, 8
          %s235 = scalar_lea.vmem %s4, %s234
        $region36: #{tpu_custom_call.1} parent=27 // pred_fallthru
          _
      $region28: #{tpu_custom_call.1} parent=5 // pred_fallthru
        _
      %p236 = scmp.le.s32.totalorder 1, %s14
      %p237 = scmp.lt.s32.totalorder %s14, 3
      %p238 = pnand %p236, %p237
      %p239 = pneg %p238
      // Predicated region
      $region37: #{tpu_custom_call.1} parent=5 // pred_check
        _
      $region38: #{tpu_custom_call.1} parent=5 // pred_check_branch
        %241 = sbr.rel (%p238) target = $region40
      $region39: #{tpu_custom_call.1} parent=5 // pred_region
        %s242 = ssub.s32 %s14, 1
        %p243 = scmp.lt.s32.totalorder %s23, 1
        %s244 = scalar_select %p243, %s23, 1
        %s245 = smul.addr %s244, 8
        %s246 = scalar_lea.vmem %s0, %s245
        %p247 = pneg %p52
        %p248 = pneg %p49
        %s249 = smul.u32 16, %s24
        %p250 = scmp.lt.s32.totalorder %s249, 15
        %s251 = scalar_select %p250, %s249, 15
        %s252 = smul.addr %s251, 8
        %s253 = scalar_lea.vmem %s1, %s252
        %p254 = pneg %p78
        %p255 = pneg %p75
        %p256 = scmp.lt.s32.totalorder %s24, 0
        %s257 = scalar_select %p256, %s24, 0
        %s258 = scalar_lea.vmem %s2, %s257
        %p259 = pneg %p104
        %p260 = pneg %p101
        %p261 = scmp.lt.s32.totalorder %s24, 0
        %s262 = scalar_select %p261, %s24, 0
        %s263 = scalar_lea.vmem %s3, %s262
        %p264 = pneg %p130
        %p265 = pneg %p127
        %p266 = scmp.lt.s32.totalorder %s23, 1
        %s267 = scalar_select %p266, %s23, 1
        %s268 = smul.addr %s267, 8
        %s269 = scalar_lea.vmem %s4, %s268
        %p270 = pneg %p156
        %p271 = pneg %p153
        %p272 = pneg %p182
        %p273 = pneg %p179
        %s274 = sand.u32 %s169, 1
        %s275 = scalar_lea.sflag [#allocation4], %s274
        %s276 = sand.u32 %s169, 1
        %s277 = scalar_lea.vmem [#allocation3], %s276
        %p278 = scmp.lt.s32.totalorder %s23, 1
        %s279 = scalar_select %p278, %s23, 1
        %s280 = smul.addr %s279, 8
        %s281 = scalar_lea.vmem %s0, %s280
        %s282 = smul.u32 16, %s24
        %p283 = scmp.lt.s32.totalorder %s282, 15
        %s284 = scalar_select %p283, %s282, 15
        %s285 = smul.addr %s284, 8
        %s286 = scalar_lea.vmem %s1, %s285
        %s287 = smul.u32 16, %s24
        %p288 = scmp.lt.s32.totalorder %s24, 0
        %s289 = scalar_select %p288, %s24, 0
        %s290 = scalar_lea.vmem %s2, %s289
        %p291 = scmp.lt.s32.totalorder %s24, 0
        %s292 = scalar_select %p291, %s24, 0
        %s293 = scalar_lea.vmem %s3, %s292
        %p294 = scmp.lt.s32.totalorder %s23, 1
        %s295 = scalar_select %p294, %s23, 1
        %s296 = smul.addr %s295, 8
        %s297 = scalar_lea.vmem %s4, %s296
        %p299 = scmp.eq.s32.totalorder %s24, 0
        // Predicated region
        $region41: #{tpu_custom_call.1} parent=39 // pred_check
          %p300 = pneg %p299
        $region42: #{tpu_custom_call.1} parent=39 // pred_check_branch
          %302 = sbr.rel (%p300) target = $region44
        $region43: #{tpu_custom_call.1} parent=39 // pred_region
          %v303 = vld [vmem:[%s281] sm:$0xff]
          %v304 = vmul.f32 %v303, %v303
          %vm305 = vcmask 523264
          %v306 = vsel %vm305, %v304, 0.0
          %307 = vadd.xlane.f32.xlu0 %v306
          %v308 = vpop.xlane.xlu0 %307
          %vm309 = vcmask 7168
          %310 = vst.msk [vmem:[#allocation2] sm:$0xff] %vm309, %v308
        $region44: #{tpu_custom_call.1} parent=39 // pred_fallthru
          _
        %v311 = vld [vmem:[%s281] sm:$0xff]
        %v312 = vpack.c.bf16 %v311, %v311
        %v313 = vld [vmem:[%s286] sm:$0xff]
        %v314 = vld [vmem:[%s286 + $0x8] sm:$0xff]
        %v315 = vld [vmem:[%s286 + $0x10] sm:$0xff]
        %v316 = vld [vmem:[%s286 + $0x18] sm:$0xff]
        %v317 = vld [vmem:[%s286 + $0x20] sm:$0xff]
        %v318 = vld [vmem:[%s286 + $0x28] sm:$0xff]
        %v319 = vld [vmem:[%s286 + $0x30] sm:$0xff]
        %v320 = vld [vmem:[%s286 + $0x38] sm:$0xff]
        %v321 = vld [vmem:[%s286 + $0x40] sm:$0xff]
        %v322 = vld [vmem:[%s286 + $0x48] sm:$0xff]
        %v323 = vld [vmem:[%s286 + $0x50] sm:$0xff]
        %v324 = vld [vmem:[%s286 + $0x58] sm:$0xff]
        %v325 = vld [vmem:[%s286 + $0x60] sm:$0xff]
        %v326 = vld [vmem:[%s286 + $0x68] sm:$0xff]
        %v327 = vld [vmem:[%s286 + $0x70] sm:$0xff]
        %v328 = vld [vmem:[%s286 + $0x78] sm:$0xff]
        %v329 = vpack.c.bf16 %v314, %v313
        %v330 = vpack.c.bf16 %v316, %v315
        %v331 = vpack.c.bf16 %v318, %v317
        %v332 = vpack.c.bf16 %v320, %v319
        %v333 = vpack.c.bf16 %v322, %v321
        %v334 = vpack.c.bf16 %v324, %v323
        %v335 = vpack.c.bf16 %v326, %v325
        %v336 = vpack.c.bf16 %v328, %v327
        %vm337 = vcmask 523264
        %v339 = vsel %vm337, %v312, 0
        %v342 = vsel %vm337, %v329, 0
        %v345 = vsel %vm337, %v330, 0
        %v348 = vsel %vm337, %v331, 0
        %v351 = vsel %vm337, %v332, 0
        %v354 = vsel %vm337, %v333, 0
        %v357 = vsel %vm337, %v334, 0
        %v360 = vsel %vm337, %v335, 0
        %v363 = vsel %vm337, %v336, 0
        %365 = vmatprep.subr.bf16.mxu0 0
        %366 = vmatpush1.bf16.xpose.msra.mxu0 %v342
        %367 = vmatprep.subr.bf16.mxu0 0
        %368 = vmatpush1.bf16.xpose.msra.mxu0 %v345
        %369 = vmatprep.subr.bf16.mxu0 0
        %370 = vmatpush1.bf16.xpose.msra.mxu0 %v348
        %371 = vmatprep.subr.bf16.mxu0 0
        %372 = vmatpush1.bf16.xpose.msra.mxu0 %v351
        %373 = vmatprep.subr.bf16.mxu0 0
        %374 = vmatpush1.bf16.xpose.msra.mxu0 %v354
        %375 = vmatprep.subr.bf16.mxu0 0
        %376 = vmatpush1.bf16.xpose.msra.mxu0 %v357
        %377 = vmatprep.subr.bf16.mxu0 0
        %378 = vmatpush1.bf16.xpose.msra.mxu0 %v360
        %379 = vmatprep.subr.bf16.mxu0 0
        %380 = vmatpush1.bf16.xpose.msra.mxu0 %v363
        %381 = vmatprep.subr.bf16.mxu0 0
        %382 = vmatpush1.bf16.xpose.msra.mxu0 0
        %383 = vmatprep.subr.bf16.mxu0 0
        %384 = vmatpush1.bf16.xpose.msra.mxu0 0
        %385 = vmatprep.subr.bf16.mxu0 0
        %386 = vmatpush1.bf16.xpose.msra.mxu0 0
        %387 = vmatprep.subr.bf16.mxu0 0
        %388 = vmatpush1.bf16.xpose.msra.mxu0 0
        %389 = vmatprep.subr.bf16.mxu0 0
        %390 = vmatpush1.bf16.xpose.msra.mxu0 0
        %391 = vmatprep.subr.bf16.mxu0 0
        %392 = vmatpush1.bf16.xpose.msra.mxu0 0
        %393 = vmatprep.subr.bf16.mxu0 0
        %394 = vmatpush1.bf16.xpose.msra.mxu0 0
        %395 = vmatprep.subr.bf16.mxu0 0
        %396 = vmatpush1.bf16.xpose.msra.mxu0 0
        %397 = vmatprep.mubr.bf16.mxu0 0
        %398 = vmatmul.mubr.bf16.gmra.mrb[0].mxu0 %v339
        %v399 = vpop.f32.mrb[0].mxu0
        %v400 = vadd.f32 0.0, %v399
        %v401 = vpop.f32.mrb[0].mxu0
        %v402 = vpop.f32.mrb[0].mxu0
        %v403 = vpop.f32.mrb[0].mxu0
        %404 = vdwg.mxu0
        %v405 = vld [vmem:[#allocation2] sm:$0xff]
        %v406 = vld [vmem:[%s290] sm:$0x1]
        %408 = vset.pattern.permute.xlu0 0
        %409 = vperm.xlu0 %408, %v405
        %v410 = vpop.permute.xlu0 %409
        %v413 = vlaneseq
        %v414 = vshrl.u32 %v413, 7
        %v415 = vsub.s32 0, %v414
        %v416 = vrot.slane %v406, %v415
        %v418 = vadd.f32 %v410, %v416
        %v419 = vmul.f32 %v400, 2.0
        %v420 = vsub.f32 %v418, %v419
        %s421 = smul.u32 %s24, 128
        %v422 = vlaneseq
        %v423 = vand.u32 %v422, 127
        %v424 = vstv %s421
        %v425 = vadd.s32 %v424, %v423
        %v426 = vld [vmem:[%s297] sm:$0xff]
        %427 = vset.pattern.permute.xlu0 0
        %428 = vperm.xlu0 %427, %v426
        %v429 = vpop.permute.xlu0 %428
        %vm430 = vcmp.eq.s32.totalorder %v429, %v425
        %v431 = vsel %vm430, 0.0, %v420
        %v432 = vmax.f32 %v431, 1e-12
        %v433 = vmin.f32 %v432, 1e+12
        %v434 = vld [vmem:[%s293] sm:$0x1]
        %v436 = vlaneseq
        %v437 = vshrl.u32 %v436, 7
        %v438 = vsub.s32 0, %v437
        %v439 = vrot.slane %v434, %v438
        %v441 = vmul.f32 %v433, %v439
        %v442 = vrot.slane %v441, 4
        %v443 = vadd.f32 %v441, %v442
        %v444 = vrot.slane %v443, 2
        %v445 = vadd.f32 %v443, %v444
        %v446 = vrot.slane %v445, 1
        %v447 = vadd.f32 %v445, %v446
        %448 = vst [vmem:[%s277] sm:$0x1] %v447
        %s449 = sand.u32 %s169, 1
        %s450 = scalar_lea.sflag [#allocation4], %s449
        %s451 = sand.u32 %s169, 1
        %s452 = scalar_lea.vmem [#allocation3], %s451
        // Predicated region
        $region45: #{tpu_custom_call.1} parent=39 // pred_check
          %p453 = pneg %p179
        $region46: #{tpu_custom_call.1} parent=39 // pred_check_branch
          %455 = sbr.rel (%p453) target = $region48
        $region47: #{tpu_custom_call.1} parent=39 // pred_region
          %s457 = ssub.s32 16, 16
          %458 = vsyncadd %s450, %s457
          %s459 = smul.addr %s23, 16
          %s460 = scalar_lea.hbm %s5, %s459
          %s462 = sshll.u32 %s452, 4
          %s463 = int_to_ptr.vmem [resolvable:$true] %s462
          %465 = dma.vmem_to_hbm [thread:$0]  %s463, 16, %s460, %s450
        $region48: #{tpu_custom_call.1} parent=39 // pred_fallthru
          _
      $region40: #{tpu_custom_call.1} parent=5 // pred_fallthru
        _
      %p466 = scmp.le.s32.totalorder 2, %s14
      // Predicated region
      $region49: #{tpu_custom_call.1} parent=5 // pred_check
        %p467 = pneg %p466
      $region50: #{tpu_custom_call.1} parent=5 // pred_check_branch
        %469 = sbr.rel (%p467) target = $region52
      $region51: #{tpu_custom_call.1} parent=5 // pred_region
        %s470 = ssub.s32 %s14, 2
        // Predicated region
        $region53: #{tpu_custom_call.1} parent=51 // pred_check
          %p471 = pneg %p185
        $region54: #{tpu_custom_call.1} parent=51 // pred_check_branch
          %473 = sbr.rel (%p471) target = $region56
        $region55: #{tpu_custom_call.1} parent=51 // pred_region
          %s474 = sand.u32 %s170, 1
          %s475 = scalar_lea.sflag [#allocation4], %s474
          %s476 = sand.u32 %s170, 1
          %s477 = scalar_lea.vmem [#allocation3], %s476
          %478 = dma.done %s475, 16
        $region56: #{tpu_custom_call.1} parent=51 // pred_fallthru
          _
      $region52: #{tpu_custom_call.1} parent=5 // pred_fallthru
        _
    $region6: #{tpu_custom_call.1} parent=1 // loop_footer
      %s18 = sadd.s32 1, %s14
    $region7: #{tpu_custom_call.1} parent=1 // loop_footer_branch
      %13 = sbr.rel target = $region3
    $region8: #{tpu_custom_call.1} parent=1 // loop_exit
      _
    %479 = vsyncpa [#allocation4], 1
    %s480 = scalar_lea.sflag [#allocation4], 1
    %481 = vsyncpa %s480, 1

</llo_original>
